<compile_context>
chip_gen: v5e
topology: v5e:2x2
jax: 0.10.0
libtpu: 0.0.40
codegen_flags: <defaults>
</compile_context>

<pallas_src>
import functools

import jax
import jax.numpy as jnp
from jax.experimental import pallas as pl
from jax.experimental.pallas import tpu as pltpu


def _round_up(x, m):
    return (x + m - 1) // m * m


def _pick_image_block(N, max_b=8):
    """Largest divisor of N that is <= max_b and keeps the grid length >= 2."""
    best = 1
    for b in range(1, min(max_b, N) + 1):
        if N % b == 0 and (N // b >= 2 or N <= 1):
            best = b
    return best


# ---------------------------------------------------------------------------
# Pallas kernel: fused im2col (VMEM scratch) + single matmul + bias + ReLU
# ---------------------------------------------------------------------------
def _conv_im2col_kernel(x_ref, w_ref, b_ref, o_ref, patches_ref,
                        *, B, K, Cin_p, Wp, L_out):
    # x_ref:       (B, Cin_p, L_in)        bf16  zero-padded images, flat over (Hp, Wp)
    # w_ref:       (Cout_p, K*K*Cin_p)     bf16  tap-major, channel-minor columns
    # b_ref:       (Cout_p, 1)             f32
    # o_ref:       (B, Cout_p, L_out)      f32   L_out = H*Wp (padded-width trick)
    # patches_ref: (K*K*Cin_p, L_out)      bf16  im2col slab scratch (one image)
    for b in range(B):
        # Build the im2col slab: one shifted, contiguous bf16 slice per tap,
        # copied ref -> scratch (no f32 round trip, no whole-image vreg copy).
        for ki in range(K):
            for kj in range(K):
                t = ki * K + kj
                off = ki * Wp + kj                      # flat shift of tap (ki, kj)
                patches_ref[t * Cin_p:(t + 1) * Cin_p, :] = \
                    x_ref[b, :, off:off + L_out]
        # Single MXU matmul with the full K*K*Cin_p contraction, f32 accumulate.
        acc = jnp.dot(w_ref[...], patches_ref[...],
                      preferred_element_type=jnp.float32)   # (Cout_p, L_out)
        o_ref[b] = jnp.maximum(acc + b_ref[...], 0.0)


# ---------------------------------------------------------------------------
# Wrapper: weight-norm prep, padding/flattening glue, pallas_call
# ---------------------------------------------------------------------------
def conv_sep_pallas(x, weight_v, weight_g, bias, *, kernel_size):
    """Forward of Conv_sep (seperate=False): weight-normed conv2d ("same" pad) + ReLU.

    x:        (N, Cin, H, W)     NCHW
    weight_v: (Cout, Cin, K, K)  weight_norm 'v'
    weight_g: (Cout,)            weight_norm 'g'
    bias:     (Cout,)
    returns:  (N, Cout, H, W)    float32, NCHW
    """
    N, Cin, H, W = x.shape
    Cout = weight_v.shape[0]
    K = kernel_size
    assert K % 2 == 1, "same-size output assumes odd kernel size (module uses padding=K//2)"
    pad = K // 2
    Hp, Wp = H + 2 * pad, W + 2 * pad

    Cin_p = _round_up(Cin, 8)          # sublane-friendly channel dim
    Cout_p = _round_up(Cout, 8)        # f32 output rows -> sublane tile of 8
    KKC = K * K * Cin_p                # fused contraction depth
    L_out = H * Wp                     # flat output length at padded width
    # One extra padded bottom row covers the largest tap offset on the last
    # output row (needs Hp*Wp + K - 1 <= L_in); lets us use a single jnp.pad.
    Hp_ext = Hp + (1 if K > 1 else 0)
    L_in = Hp_ext * Wp

    B = _pick_image_block(N)           # images per grid step; grid stays >= 2

    # ---- weight norm (param prep, plain JAX glue): w = g * v / ||v|| per out channel ----
    # NOTE: like torch.nn.utils.weight_norm, no epsilon -> an all-zero v channel gives NaN.
    v = weight_v.astype(jnp.float32)
    v_norm = jnp.sqrt(jnp.sum(v ** 2, axis=(1, 2, 3), keepdims=True))
    weight = weight_g.astype(jnp.float32).reshape(Cout, 1, 1, 1) * v / v_norm  # (Cout,Cin,K,K)
    w_pad = jnp.pad(weight, ((0, Cout_p - Cout), (0, Cin_p - Cin), (0, 0), (0, 0)))
    # (Cout_p, Cin_p, K, K) -> (Cout_p, K, K, Cin_p) -> (Cout_p, K*K*Cin_p):
    # column index = (ki*K + kj)*Cin_p + c, matching the im2col slab row order.
    w_mat = jnp.transpose(w_pad, (0, 2, 3, 1)).reshape(Cout_p, KKC).astype(jnp.bfloat16)
    b_col = jnp.pad(bias.astype(jnp.float32), (0, Cout_p - Cout)).reshape(Cout_p, 1)

    # ---- input prep: bf16 FIRST, then one merged pad (channel + "same" + tail row) ----
    x_b = x.astype(jnp.bfloat16)
    x_p = jnp.pad(x_b, ((0, 0), (0, Cin_p - Cin),
                        (pad, pad + (Hp_ext - Hp)), (pad, pad)))   # (N,Cin_p,Hp_ext,Wp)
    x_flat = x_p.reshape(N, Cin_p, L_in)                           # (N,Cin_p,L_in) bf16

    # ---- VMEM budget from actual block sizes (double-buffered in/out + scratch) ----
    vmem_need = (2 * B * Cin_p * L_in * 2          # input blocks (bf16)
                 + 2 * B * Cout_p * L_out * 4      # output blocks (f32)
                 + 2 * Cout_p * KKC * 2            # resident weights (bf16)
                 + 2 * Cout_p * 4                  # bias
                 + KKC * L_out * 2)                # im2col scratch (bf16)
    vmem_limit = int(min(100 * 1024 * 1024, max(2 * vmem_need, 8 * 1024 * 1024)))

    kernel = functools.partial(_conv_im2col_kernel,
                               B=B, K=K, Cin_p=Cin_p, Wp=Wp, L_out=L_out)
    out_flat = pl.pallas_call(
        kernel,
        out_shape=jax.ShapeDtypeStruct((N, Cout_p, L_out), jnp.float32),
        grid=(N // B,),
        in_specs=[
            pl.BlockSpec((B, Cin_p, L_in), lambda n: (n, 0, 0)),       # B images / step
            pl.BlockSpec((Cout_p, KKC), lambda n: (0, 0)),             # resident weights
            pl.BlockSpec((Cout_p, 1), lambda n: (0, 0)),               # resident bias
        ],
        out_specs=pl.BlockSpec((B, Cout_p, L_out), lambda n: (n, 0, 0)),
        scratch_shapes=[pltpu.VMEM((KKC, L_out), jnp.bfloat16)],       # im2col slab
        compiler_params=pltpu.CompilerParams(
            dimension_semantics=("parallel",),       # image axis -> both v7x TensorCores
            vmem_limit_bytes=vmem_limit,
        ),
    )(x_flat, w_mat, b_col)

    # (N, Cout_p, H*Wp) -> NCHW; strip padded-width garbage columns and channel padding.
    # (A chained consumer that accepts the padded layout could skip this pass.)
    out = out_flat.reshape(N, Cout_p, H, Wp)[:, :Cout, :, :W]
    return out


# ---------------------------------------------------------------------------
# Pure-JAX reference for sanity checking
# ---------------------------------------------------------------------------
def _reference(x, weight_v, weight_g, bias, kernel_size):
    Cout = weight_v.shape[0]
    v_norm = jnp.sqrt(jnp.sum(weight_v ** 2, axis=(1, 2, 3), keepdims=True))
    weight = weight_g.reshape(Cout, 1, 1, 1) * weight_v / v_norm
    pad = kernel_size // 2
    y = jax.lax.conv_general_dilated(
        x, weight, window_strides=(1, 1), padding=[(pad, pad), (pad, pad)],
        dimension_numbers=("NCHW", "OIHW", "NCHW"))
    return jnp.maximum(y + bias.reshape(1, Cout, 1, 1), 0.0)


if __name__ == "__main__":
    # Small deterministic config: input_dim=4, output_dim=8, kernel_size=3
    N, Cin, H, W = 2, 4, 16, 16
    Cout, K = 8, 3

    key = jax.random.PRNGKey(0)
    kx, kv, kb = jax.random.split(key, 3)

    x = jax.random.normal(kx, (N, Cin, H, W), dtype=jnp.float32)

    # weight_norm-style init: v ~ normal, g = ||v|| (so effective weight == v at init)
    weight_v = jax.random.normal(kv, (Cout, Cin, K, K), dtype=jnp.float32) * 0.1
    weight_g = jnp.sqrt(jnp.sum(weight_v ** 2, axis=(1, 2, 3)))
    bias = jax.random.uniform(kb, (Cout,), dtype=jnp.float32, minval=-0.1, maxval=0.1)

    fwd = jax.jit(functools.partial(conv_sep_pallas, kernel_size=K))
    out = jax.block_until_ready(fwd(x, weight_v, weight_g, bias))

    ref = _reference(x, weight_v, weight_g, bias, K)
    assert out.shape == (N, Cout, H, W)
    # bf16 input/weight streams -> looser tolerance than an all-f32 version.
    assert jnp.allclose(out, ref, rtol=5e-2, atol=5e-2), (
        f"mismatch vs reference conv, max abs err = {jnp.max(jnp.abs(out - ref))}")
    print("KERNEL_OK")
</pallas_src>

<mosaic_0001>
module attributes {stable_mosaic.version = 11 : i64} {
  func.func @_conv_im2col_kernel(%arg0: i32, %arg1: memref<1x8x342xbf16, #tpu.memory_space<vmem>>, %arg2: memref<8x72xbf16, #tpu.memory_space<vmem>>, %arg3: memref<8x1xf32, #tpu.memory_space<vmem>>, %arg4: memref<1x8x288xf32, #tpu.memory_space<vmem>>, %arg5: memref<72x288xbf16, #tpu.memory_space<vmem>>) attributes {dimension_semantics = [#tpu.dimension_semantics<parallel>], iteration_bounds = array<i64: 2>, scalar_prefetch = 0 : i64, scratch_operands = 1 : i64, tpu.core_type = #tpu.core_type<tc>, window_params = [{transform_indices = @transform_0, window_bounds = array<i64: 1, 8, 342>}, {pipeline_mode = #tpu.pipeline_mode<synchronous>, transform_indices = @transform_1, window_bounds = array<i64: 8, 72>}, {pipeline_mode = #tpu.pipeline_mode<synchronous>, transform_indices = @transform_2, window_bounds = array<i64: 8, 1>}, {transform_indices = @transform_3, window_bounds = array<i64: 1, 8, 288>}]} {
    %c0 = arith.constant 0 : index
    %c0_0 = arith.constant 0 : index
    %c0_1 = arith.constant 0 : index
    %0 = vector.load %arg1[%c0, %c0_0, %c0_1] : memref<1x8x342xbf16, #tpu.memory_space<vmem>>, vector<1x8x288xbf16>
    %1 = vector.shape_cast %0 : vector<1x8x288xbf16> to vector<8x288xbf16>
    %c0_2 = arith.constant 0 : index
    %c0_3 = arith.constant 0 : index
    %2 = vector.load %arg5[%c0_2, %c0_3] : memref<72x288xbf16, #tpu.memory_space<vmem>>, vector<8x288xbf16>
    tpu.vector_store %arg5[%c0_2, %c0_3], %1 {strides = array<i32>} : memref<72x288xbf16, #tpu.memory_space<vmem>>, vector<8x288xbf16>,
    %c0_4 = arith.constant 0 : index
    %c0_5 = arith.constant 0 : index
    %c1 = arith.constant 1 : index
    %3 = vector.load %arg1[%c0_4, %c0_5, %c1] : memref<1x8x342xbf16, #tpu.memory_space<vmem>>, vector<1x8x288xbf16>
    %4 = vector.shape_cast %3 : vector<1x8x288xbf16> to vector<8x288xbf16>
    %c8 = arith.constant 8 : index
    %c0_6 = arith.constant 0 : index
    %5 = vector.load %arg5[%c8, %c0_6] : memref<72x288xbf16, #tpu.memory_space<vmem>>, vector<8x288xbf16>
    tpu.vector_store %arg5[%c8, %c0_6], %4 {strides = array<i32>} : memref<72x288xbf16, #tpu.memory_space<vmem>>, vector<8x288xbf16>,
    %c0_7 = arith.constant 0 : index
    %c0_8 = arith.constant 0 : index
    %c2 = arith.constant 2 : index
    %6 = vector.load %arg1[%c0_7, %c0_8, %c2] : memref<1x8x342xbf16, #tpu.memory_space<vmem>>, vector<1x8x288xbf16>
    %7 = vector.shape_cast %6 : vector<1x8x288xbf16> to vector<8x288xbf16>
    %c16 = arith.constant 16 : index
    %c0_9 = arith.constant 0 : index
    %8 = vector.load %arg5[%c16, %c0_9] : memref<72x288xbf16, #tpu.memory_space<vmem>>, vector<8x288xbf16>
    tpu.vector_store %arg5[%c16, %c0_9], %7 {strides = array<i32>} : memref<72x288xbf16, #tpu.memory_space<vmem>>, vector<8x288xbf16>,
    %c0_10 = arith.constant 0 : index
    %c0_11 = arith.constant 0 : index
    %c18 = arith.constant 18 : index
    %9 = vector.load %arg1[%c0_10, %c0_11, %c18] : memref<1x8x342xbf16, #tpu.memory_space<vmem>>, vector<1x8x288xbf16>
    %10 = vector.shape_cast %9 : vector<1x8x288xbf16> to vector<8x288xbf16>
    %c24 = arith.constant 24 : index
    %c0_12 = arith.constant 0 : index
    %11 = vector.load %arg5[%c24, %c0_12] : memref<72x288xbf16, #tpu.memory_space<vmem>>, vector<8x288xbf16>
    tpu.vector_store %arg5[%c24, %c0_12], %10 {strides = array<i32>} : memref<72x288xbf16, #tpu.memory_space<vmem>>, vector<8x288xbf16>,
    %c0_13 = arith.constant 0 : index
    %c0_14 = arith.constant 0 : index
    %c19 = arith.constant 19 : index
    %12 = vector.load %arg1[%c0_13, %c0_14, %c19] : memref<1x8x342xbf16, #tpu.memory_space<vmem>>, vector<1x8x288xbf16>
    %13 = vector.shape_cast %12 : vector<1x8x288xbf16> to vector<8x288xbf16>
    %c32 = arith.constant 32 : index
    %c0_15 = arith.constant 0 : index
    %14 = vector.load %arg5[%c32, %c0_15] : memref<72x288xbf16, #tpu.memory_space<vmem>>, vector<8x288xbf16>
    tpu.vector_store %arg5[%c32, %c0_15], %13 {strides = array<i32>} : memref<72x288xbf16, #tpu.memory_space<vmem>>, vector<8x288xbf16>,
    %c0_16 = arith.constant 0 : index
    %c0_17 = arith.constant 0 : index
    %c20 = arith.constant 20 : index
    %15 = vector.load %arg1[%c0_16, %c0_17, %c20] : memref<1x8x342xbf16, #tpu.memory_space<vmem>>, vector<1x8x288xbf16>
    %16 = vector.shape_cast %15 : vector<1x8x288xbf16> to vector<8x288xbf16>
    %c40 = arith.constant 40 : index
    %c0_18 = arith.constant 0 : index
    %17 = vector.load %arg5[%c40, %c0_18] : memref<72x288xbf16, #tpu.memory_space<vmem>>, vector<8x288xbf16>
    tpu.vector_store %arg5[%c40, %c0_18], %16 {strides = array<i32>} : memref<72x288xbf16, #tpu.memory_space<vmem>>, vector<8x288xbf16>,
    %c0_19 = arith.constant 0 : index
    %c0_20 = arith.constant 0 : index
    %c36 = arith.constant 36 : index
    %18 = vector.load %arg1[%c0_19, %c0_20, %c36] : memref<1x8x342xbf16, #tpu.memory_space<vmem>>, vector<1x8x288xbf16>
    %19 = vector.shape_cast %18 : vector<1x8x288xbf16> to vector<8x288xbf16>
    %c48 = arith.constant 48 : index
    %c0_21 = arith.constant 0 : index
    %20 = vector.load %arg5[%c48, %c0_21] : memref<72x288xbf16, #tpu.memory_space<vmem>>, vector<8x288xbf16>
    tpu.vector_store %arg5[%c48, %c0_21], %19 {strides = array<i32>} : memref<72x288xbf16, #tpu.memory_space<vmem>>, vector<8x288xbf16>,
    %c0_22 = arith.constant 0 : index
    %c0_23 = arith.constant 0 : index
    %c37 = arith.constant 37 : index
    %21 = vector.load %arg1[%c0_22, %c0_23, %c37] : memref<1x8x342xbf16, #tpu.memory_space<vmem>>, vector<1x8x288xbf16>
    %22 = vector.shape_cast %21 : vector<1x8x288xbf16> to vector<8x288xbf16>
    %c56 = arith.constant 56 : index
    %c0_24 = arith.constant 0 : index
    %23 = vector.load %arg5[%c56, %c0_24] : memref<72x288xbf16, #tpu.memory_space<vmem>>, vector<8x288xbf16>
    tpu.vector_store %arg5[%c56, %c0_24], %22 {strides = array<i32>} : memref<72x288xbf16, #tpu.memory_space<vmem>>, vector<8x288xbf16>,
    %c0_25 = arith.constant 0 : index
    %c0_26 = arith.constant 0 : index
    %c38 = arith.constant 38 : index
    %24 = vector.load %arg1[%c0_25, %c0_26, %c38] : memref<1x8x342xbf16, #tpu.memory_space<vmem>>, vector<1x8x288xbf16>
    %25 = vector.shape_cast %24 : vector<1x8x288xbf16> to vector<8x288xbf16>
    %c64 = arith.constant 64 : index
    %c0_27 = arith.constant 0 : index
    %26 = vector.load %arg5[%c64, %c0_27] : memref<72x288xbf16, #tpu.memory_space<vmem>>, vector<8x288xbf16>
    tpu.vector_store %arg5[%c64, %c0_27], %25 {strides = array<i32>} : memref<72x288xbf16, #tpu.memory_space<vmem>>, vector<8x288xbf16>,
    %c0_28 = arith.constant 0 : index
    %c0_29 = arith.constant 0 : index
    %27 = vector.load %arg2[%c0_28, %c0_29] : memref<8x72xbf16, #tpu.memory_space<vmem>>, vector<8x72xbf16>
    %c0_30 = arith.constant 0 : index
    %c0_31 = arith.constant 0 : index
    %28 = vector.load %arg5[%c0_30, %c0_31] : memref<72x288xbf16, #tpu.memory_space<vmem>>, vector<72x288xbf16>
    %cst = arith.constant dense<0.000000e+00> : vector<8x288xf32>
    %29 = tpu.matmul %27, %28, %cst {dimension_numbers = #tpu.dot_dimension_numbers<[1], [0], [0], [1], [0, 0, 1, 1], [], []>} : vector<8x72xbf16>, vector<72x288xbf16>, vector<8x288xf32> -> vector<8x288xf32>
    %c0_32 = arith.constant 0 : index
    %c0_33 = arith.constant 0 : index
    %30 = vector.load %arg3[%c0_32, %c0_33] : memref<8x1xf32, #tpu.memory_space<vmem>>, vector<8x1xf32>
    %31 = vector.broadcast %30 : vector<8x1xf32> to vector<8x288xf32>
    %32 = arith.addf %29, %31 : vector<8x288xf32>
    %cst_34 = arith.constant 0.000000e+00 : f32
    %33 = vector.broadcast %cst_34 : f32 to vector<8x288xf32>
    %34 = arith.maximumf %32, %33 : vector<8x288xf32>
    %c0_35 = arith.constant 0 : index
    %c0_36 = arith.constant 0 : index
    %c0_37 = arith.constant 0 : index
    %35 = vector.load %arg4[%c0_35, %c0_36, %c0_37] : memref<1x8x288xf32, #tpu.memory_space<vmem>>, vector<1x8x288xf32>
    %36 = vector.shape_cast %35 : vector<1x8x288xf32> to vector<8x288xf32>
    %37 = vector.shape_cast %34 : vector<8x288xf32> to vector<1x8x288xf32>
    tpu.vector_store %arg4[%c0_35, %c0_36, %c0_37], %37 {strides = array<i32>} : memref<1x8x288xf32, #tpu.memory_space<vmem>>, vector<1x8x288xf32>,
    return
  }
  func.func @transform_0(%arg0: i32) -> (i32, i32, i32) {
    %c0_i32 = arith.constant 0 : i32
    %c0_i32_0 = arith.constant 0 : i32
    %c0_i32_1 = arith.constant 0 : i32
    return %arg0, %c0_i32, %c0_i32_0 : i32, i32, i32
  }
  func.func @transform_1(%arg0: i32) -> (i32, i32) {
    %c0_i32 = arith.constant 0 : i32
    %c0_i32_0 = arith.constant 0 : i32
    %c0_i32_1 = arith.constant 0 : i32
    return %c0_i32, %c0_i32_0 : i32, i32
  }
  func.func @transform_2(%arg0: i32) -> (i32, i32) {
    %c0_i32 = arith.constant 0 : i32
    %c0_i32_0 = arith.constant 0 : i32
    %c0_i32_1 = arith.constant 0 : i32
    return %c0_i32, %c0_i32_0 : i32, i32
  }
  func.func @transform_3(%arg0: i32) -> (i32, i32, i32) {
    %c0_i32 = arith.constant 0 : i32
    %c0_i32_0 = arith.constant 0 : i32
    %c0_i32_1 = arith.constant 0 : i32
    return %arg0, %c0_i32, %c0_i32_0 : i32, i32, i32
  }
}

</mosaic_0001>

<llo_original>
// kernel: conv_sep_pallas.1
$region0: #{conv_sep_pallas.1}
  #allocation0 [shape = 'u32[]', space=smem, size = 0x4, offset = 0x4, fixed_abs, tag = 'smem constant byte address 0x4 - core index']
  #allocation1 [shape = 'u32[72,128]{1,0:T(1,128)}', space=vmem, size = 0x9000, scoped, tag = 'internal scratch']
  #allocation2 [shape = 'bf16[72,288]{1,0:T(8,128)(2,1)}', space=vmem, size = 0xd800, scoped, tag = 'scratch operand']
  %s0 = inlined_call_operand.vmem [shape: bf16[2,8,342], index: 0, kind: input, shape index: {}]
  %s1 = inlined_call_operand.vmem [shape: bf16[8,72], index: 1, kind: input, shape index: {}]
  %s2 = inlined_call_operand.vmem [shape: f32[8,1], index: 2, kind: input, shape index: {}]
  %s3 = inlined_call_operand.vmem [shape: f32[2,8,288], index: 3, kind: output, shape index: {}]
  %s4 = sld [smem:[#allocation0]]
  $region45: #{conv_sep_pallas.1} parent=0
    _
  %s6 = ssub.s32 1, %s4
  %s7 = scalar_select 0, %s6, %s4
  loop: start=0, step=1, limit=4
  $region2: #{conv_sep_pallas.1} parent=0 // loop_pre_header
    _
  $region3: #{conv_sep_pallas.1} parent=0 // loop_header
    %s9 = sphi 0, %s13
    %p10 = scmp.ge.s32.totalorder %s9, 4
    %s19 = sphi 0, %s21
    %s22 = sphi 0, %s19
    %s23 = sphi 0, %s22
    %s39 = sphi 0, %s23
    %s43 = sphi 0, %s43
    %s45 = sphi 0, %s43
    %s46 = sphi 0, %s45
    %s60 = sphi 0, %s46
    %s64 = sphi 0, %s64
    %s66 = sphi 0, %s64
    %s67 = sphi 0, %s66
    %s81 = sphi 0, %s67
    %s87 = sphi 0, %s89
    %s90 = sphi 0, %s87
    %s91 = sphi 0, %s90
    %s107 = sphi 0, %s91
  $region4: #{conv_sep_pallas.1} parent=0 // loop_header_branch
    %12 = sbr.rel (%p10) target = $region8
  $region5: #{conv_sep_pallas.1} parent=0 // loop_body
    %s14 = ssub.s32 %s9, 1
    %s15 = ssub.s32 %s9, 2
    %s16 = sadd.s32 %s9, 1
    %s17 = ssub.s32 %s9, %s16
    %p18 = scmp.eq.s32.totalorder %s17, 0
    %s20 = sadd.s32 %s19, 1
    %s21 = scalar_select %p18, %s19, %s20
    %p24 = pneg %p18
    %p25 = scmp.eq.s32.totalorder %s9, 1
    %p26 = por %p24, %p25
    %p27 = scmp.ne.s32.totalorder %s19, %s22
    %p28 = scmp.eq.s32.totalorder %s9, 0
    %p29 = por %p27, %p28
    %p30 = scmp.ne.s32.totalorder %s19, %s22
    %p31 = scmp.eq.s32.totalorder %s14, 1
    %p32 = por %p30, %p31
    %p33 = scmp.ne.s32.totalorder %s22, %s23
    %p34 = scmp.eq.s32.totalorder %s14, 0
    %p35 = por %p33, %p34
    %p36 = scmp.ne.s32.totalorder %s22, %s23
    %p37 = scmp.eq.s32.totalorder %s15, 1
    %p38 = por %p36, %p37
    %p40 = scmp.ne.s32.totalorder %s23, %s39
    %p41 = scmp.eq.s32.totalorder %s15, 0
    %p42 = por %p40, %p41
    %s44 = sadd.s32 %s43, 1
    %p47 = scmp.eq.s32.totalorder %s9, 1
    %p48 = scmp.ne.s32.totalorder %s43, %s45
    %p49 = scmp.eq.s32.totalorder %s9, 0
    %p50 = por %p48, %p49
    %p51 = scmp.ne.s32.totalorder %s43, %s45
    %p52 = scmp.eq.s32.totalorder %s14, 1
    %p53 = por %p51, %p52
    %p54 = scmp.ne.s32.totalorder %s45, %s46
    %p55 = scmp.eq.s32.totalorder %s14, 0
    %p56 = por %p54, %p55
    %p57 = scmp.ne.s32.totalorder %s45, %s46
    %p58 = scmp.eq.s32.totalorder %s15, 1
    %p59 = por %p57, %p58
    %p61 = scmp.ne.s32.totalorder %s46, %s60
    %p62 = scmp.eq.s32.totalorder %s15, 0
    %p63 = por %p61, %p62
    %s65 = sadd.s32 %s64, 1
    %p68 = scmp.eq.s32.totalorder %s9, 1
    %p69 = scmp.ne.s32.totalorder %s64, %s66
    %p70 = scmp.eq.s32.totalorder %s9, 0
    %p71 = por %p69, %p70
    %p72 = scmp.ne.s32.totalorder %s64, %s66
    %p73 = scmp.eq.s32.totalorder %s14, 1
    %p74 = por %p72, %p73
    %p75 = scmp.ne.s32.totalorder %s66, %s67
    %p76 = scmp.eq.s32.totalorder %s14, 0
    %p77 = por %p75, %p76
    %p78 = scmp.ne.s32.totalorder %s66, %s67
    %p79 = scmp.eq.s32.totalorder %s15, 1
    %p80 = por %p78, %p79
    %p82 = scmp.ne.s32.totalorder %s67, %s81
    %p83 = scmp.eq.s32.totalorder %s15, 0
    %p84 = por %p82, %p83
    %s85 = ssub.s32 %s9, %s16
    %p86 = scmp.eq.s32.totalorder %s85, 0
    %s88 = sadd.s32 %s87, 1
    %s89 = scalar_select %p86, %s87, %s88
    %p92 = pneg %p86
    %p93 = scmp.eq.s32.totalorder %s9, 1
    %p94 = por %p92, %p93
    %p95 = scmp.ne.s32.totalorder %s87, %s90
    %p96 = scmp.eq.s32.totalorder %s9, 0
    %p97 = por %p95, %p96
    %p98 = scmp.ne.s32.totalorder %s87, %s90
    %p99 = scmp.eq.s32.totalorder %s14, 1
    %p100 = por %p98, %p99
    %p101 = scmp.ne.s32.totalorder %s90, %s91
    %p102 = scmp.eq.s32.totalorder %s14, 0
    %p103 = por %p101, %p102
    %p104 = scmp.ne.s32.totalorder %s90, %s91
    %p105 = scmp.eq.s32.totalorder %s15, 1
    %p106 = por %p104, %p105
    %p108 = scmp.ne.s32.totalorder %s91, %s107
    %p109 = scmp.eq.s32.totalorder %s15, 0
    %p110 = por %p108, %p109
    %p111 = scmp.le.s32.totalorder 1, %s9
    %p112 = scmp.lt.s32.totalorder %s9, 3
    %p113 = pnand %p111, %p112
    %p114 = pneg %p113
    // Predicated region
    $region9: #{conv_sep_pallas.1} parent=5 // pred_check
      _
    $region10: #{conv_sep_pallas.1} parent=5 // pred_check_branch
      %116 = sbr.rel (%p113) target = $region12
    $region11: #{conv_sep_pallas.1} parent=5 // pred_region
      %s117 = ssub.s32 %s9, 1
      // Predicated region
      $region13: #{conv_sep_pallas.1} parent=11 // pred_check
        %p118 = pneg %p56
      $region14: #{conv_sep_pallas.1} parent=11 // pred_check_branch
        %120 = sbr.rel (%p118) target = $region16
      $region15: #{conv_sep_pallas.1} parent=11 // pred_region
        _
      $region16: #{conv_sep_pallas.1} parent=11 // pred_fallthru
        _
      // Predicated region
      $region17: #{conv_sep_pallas.1} parent=11 // pred_check
        %p121 = pneg %p77
      $region18: #{conv_sep_pallas.1} parent=11 // pred_check_branch
        %123 = sbr.rel (%p121) target = $region20
      $region19: #{conv_sep_pallas.1} parent=11 // pred_region
        _
      $region20: #{conv_sep_pallas.1} parent=11 // pred_fallthru
        _
    $region12: #{conv_sep_pallas.1} parent=5 // pred_fallthru
      _
    %p124 = scmp.lt.s32.totalorder %s9, 2
    // Predicated region
    $region21: #{conv_sep_pallas.1} parent=5 // pred_check
      %p125 = pneg %p124
    $region22: #{conv_sep_pallas.1} parent=5 // pred_check_branch
      %127 = sbr.rel (%p125) target = $region24
    $region23: #{conv_sep_pallas.1} parent=5 // pred_region
      // Predicated region
      $region25: #{conv_sep_pallas.1} parent=23 // pred_check
        %p128 = pneg %p29
      $region26: #{conv_sep_pallas.1} parent=23 // pred_check_branch
        %130 = sbr.rel (%p128) target = $region28
      $region27: #{conv_sep_pallas.1} parent=23 // pred_region
        %p131 = scmp.lt.s32.totalorder %s9, 1
        %s132 = scalar_select %p131, %s9, 1
        %s133 = smul.addr %s132, 3
        %s134 = smul.addr %s133, 4
        %s135 = scalar_lea.vmem %s0, %s134
      $region28: #{conv_sep_pallas.1} parent=23 // pred_fallthru
        _
    $region24: #{conv_sep_pallas.1} parent=5 // pred_fallthru
      _
    %p136 = scmp.le.s32.totalorder 1, %s9
    %p137 = scmp.lt.s32.totalorder %s9, 3
    %p138 = pnand %p136, %p137
    %p139 = pneg %p138
    // Predicated region
    $region29: #{conv_sep_pallas.1} parent=5 // pred_check
      _
    $region30: #{conv_sep_pallas.1} parent=5 // pred_check_branch
      %141 = sbr.rel (%p138) target = $region32
    $region31: #{conv_sep_pallas.1} parent=5 // pred_region
      %s142 = ssub.s32 %s9, 1
      %p143 = scmp.lt.s32.totalorder %s14, 1
      %s144 = scalar_select %p143, %s14, 1
      %s145 = smul.addr %s144, 3
      %s146 = smul.addr %s145, 4
      %s147 = scalar_lea.vmem %s0, %s146
      %p148 = pneg %p35
      %p149 = pneg %p32
      %p150 = pneg %p56
      %p151 = pneg %p53
      %p152 = pneg %p77
      %p153 = pneg %p74
      %p154 = pneg %p103
      %p155 = pneg %p100
      %p156 = scmp.lt.s32.totalorder %s14, 1
      %s157 = scalar_select %p156, %s14, 1
      %s158 = smul.addr %s157, 3
      %s159 = smul.addr %s158, 8
      %s160 = scalar_lea.vmem %s3, %s159
      %p161 = scmp.lt.s32.totalorder %s14, 1
      %s162 = scalar_select %p161, %s14, 1
      %s163 = smul.addr %s162, 3
      %s164 = smul.addr %s163, 4
      %s165 = scalar_lea.vmem %s0, %s164
      %p166 = scmp.lt.s32.totalorder %s14, 1
      %s167 = scalar_select %p166, %s14, 1
      %s168 = smul.addr %s167, 3
      %s169 = smul.addr %s168, 8
      %s170 = scalar_lea.vmem %s3, %s169
      %v172 = vld [vmem:[%s165] sm:$0xff]
      %v173 = vld [vmem:[%s165 + $0x8] sm:$0xf]
      %174 = vst [vmem:[#allocation2] sm:$0xff] %v172
      %vm175 = vcmask 257024
      %176 = vst.msk [vmem:[#allocation2 + $0x8] sm:$0xf] %vm175, %v173
      %v177 = vld [vmem:[%s165] sm:$0xff]
      %v178 = vld [vmem:[%s165 + $0x8] sm:$0xf]
      %181 = vrot.lane.b32.xlu0 %v177, 127
      %v182 = vpop.permute.xlu0 %181
      %183 = vrot.lane.b32.xlu0 %v178, 127
      %v184 = vpop.permute.xlu0 %183
      %v185 = vrot.slane %v182, 4
      %v186 = vrot.slane %v184, 4
      %vm187 = vcmask 1043456
      %v188 = vsel %vm187, %v185, %v186
      %vm189 = vcmask 1039360
      %v190 = vsel %vm189, %v182, %v188
      %193 = vst [vmem:[#allocation2 + $0xc] sm:$0xff] %v190
      %194 = vst.msk [vmem:[#allocation2 + $0x14] sm:$0xf] %vm175, %v184
      %v195 = vld [vmem:[%s165] sm:$0xff]
      %v196 = vld [vmem:[%s165 + $0x8] sm:$0xf]
      %199 = vrot.lane.b32.xlu0 %v195, 126
      %v200 = vpop.permute.xlu0 %199
      %201 = vrot.lane.b32.xlu0 %v196, 126
      %v202 = vpop.permute.xlu0 %201
      %v203 = vrot.slane %v200, 4
      %v204 = vrot.slane %v202, 4
      %v205 = vsel %vm187, %v203, %v204
      %vm206 = vcmask 1031168
      %v207 = vsel %vm206, %v200, %v205
      %210 = vst [vmem:[#allocation2 + $0x18] sm:$0xff] %v207
      %211 = vst.msk [vmem:[#allocation2 + $0x20] sm:$0xf] %vm175, %v202
      %v212 = vld [vmem:[%s165] sm:$0xff]
      %v213 = vld [vmem:[%s165 + $0x8] sm:$0xf]
      %216 = vrot.lane.b32.xlu0 %v212, 110
      %v217 = vpop.permute.xlu0 %216
      %218 = vrot.lane.b32.xlu0 %v213, 110
      %v219 = vpop.permute.xlu0 %218
      %v220 = vrot.slane %v217, 4
      %v221 = vrot.slane %v219, 4
      %v222 = vsel %vm187, %v220, %v221
      %vm223 = vcmask 900096
      %v224 = vsel %vm223, %v217, %v222
      %227 = vst [vmem:[#allocation2 + $0x24] sm:$0xff] %v224
      %228 = vst.msk [vmem:[#allocation2 + $0x2c] sm:$0xf] %vm175, %v219
      %v229 = vld [vmem:[%s165] sm:$0xff]
      %v230 = vld [vmem:[%s165 + $0x8] sm:$0xf]
      %233 = vrot.lane.b32.xlu0 %v229, 109
      %v234 = vpop.permute.xlu0 %233
      %235 = vrot.lane.b32.xlu0 %v230, 109
      %v236 = vpop.permute.xlu0 %235
      %v237 = vrot.slane %v234, 4
      %v238 = vrot.slane %v236, 4
      %v239 = vsel %vm187, %v237, %v238
      %vm240 = vcmask 891904
      %v241 = vsel %vm240, %v234, %v239
      %244 = vst [vmem:[#allocation2 + $0x30] sm:$0xff] %v241
      %245 = vst.msk [vmem:[#allocation2 + $0x38] sm:$0xf] %vm175, %v236
      %v246 = vld [vmem:[%s165] sm:$0xff]
      %v247 = vld [vmem:[%s165 + $0x8] sm:$0xf]
      %250 = vrot.lane.b32.xlu0 %v246, 108
      %v251 = vpop.permute.xlu0 %250
      %252 = vrot.lane.b32.xlu0 %v247, 108
      %v253 = vpop.permute.xlu0 %252
      %v254 = vrot.slane %v251, 4
      %v255 = vrot.slane %v253, 4
      %v256 = vsel %vm187, %v254, %v255
      %vm257 = vcmask 883712
      %v258 = vsel %vm257, %v251, %v256
      %261 = vst [vmem:[#allocation2 + $0x3c] sm:$0xff] %v258
      %262 = vst.msk [vmem:[#allocation2 + $0x44] sm:$0xf] %vm175, %v253
      %v263 = vld [vmem:[%s165] sm:$0xff]
      %v264 = vld [vmem:[%s165 + $0x8] sm:$0xf]
      %267 = vrot.lane.b32.xlu0 %v263, 92
      %v268 = vpop.permute.xlu0 %267
      %269 = vrot.lane.b32.xlu0 %v264, 92
      %v270 = vpop.permute.xlu0 %269
      %v271 = vrot.slane %v268, 4
      %v272 = vrot.slane %v270, 4
      %v273 = vsel %vm187, %v271, %v272
      %vm274 = vcmask 752640
      %v275 = vsel %vm274, %v268, %v273
      %278 = vst [vmem:[#allocation2 + $0x48] sm:$0xff] %v275
      %279 = vst.msk [vmem:[#allocation2 + $0x50] sm:$0xf] %vm175, %v270
      %v280 = vld [vmem:[%s165] sm:$0xff]
      %v281 = vld [vmem:[%s165 + $0x8] sm:$0xf]
      %284 = vrot.lane.b32.xlu0 %v280, 91
      %v285 = vpop.permute.xlu0 %284
      %286 = vrot.lane.b32.xlu0 %v281, 91
      %v287 = vpop.permute.xlu0 %286
      %v288 = vrot.slane %v285, 4
      %v289 = vrot.slane %v287, 4
      %v290 = vsel %vm187, %v288, %v289
      %vm291 = vcmask 744448
      %v292 = vsel %vm291, %v285, %v290
      %295 = vst [vmem:[#allocation2 + $0x54] sm:$0xff] %v292
      %296 = vst.msk [vmem:[#allocation2 + $0x5c] sm:$0xf] %vm175, %v287
      %v297 = vld [vmem:[%s165] sm:$0xff]
      %v298 = vld [vmem:[%s165 + $0x8] sm:$0xf]
      %301 = vrot.lane.b32.xlu0 %v297, 90
      %v302 = vpop.permute.xlu0 %301
      %303 = vrot.lane.b32.xlu0 %v298, 90
      %v304 = vpop.permute.xlu0 %303
      %v305 = vrot.slane %v302, 4
      %v306 = vrot.slane %v304, 4
      %v307 = vsel %vm187, %v305, %v306
      %vm308 = vcmask 736256
      %v309 = vsel %vm308, %v302, %v307
      %312 = vst [vmem:[#allocation2 + $0x60] sm:$0xff] %v309
      %313 = vst.msk [vmem:[#allocation2 + $0x68] sm:$0xf] %vm175, %v304
      %v314 = vld [vmem:[%s1] sm:$0xf]
      %v315 = vld [vmem:[#allocation2] sm:$0xff]
      %v316 = vld [vmem:[#allocation2 + $0x8] sm:$0xf]
      %v317 = vld [vmem:[#allocation2 + $0xc] sm:$0xff]
      %v318 = vld [vmem:[#allocation2 + $0x14] sm:$0xf]
      %v319 = vld [vmem:[#allocation2 + $0x18] sm:$0xff]
      %v320 = vld [vmem:[#allocation2 + $0x20] sm:$0xf]
      %v321 = vld [vmem:[#allocation2 + $0x24] sm:$0xff]
      %v322 = vld [vmem:[#allocation2 + $0x2c] sm:$0xf]
      %v323 = vld [vmem:[#allocation2 + $0x30] sm:$0xff]
      %v324 = vld [vmem:[#allocation2 + $0x38] sm:$0xf]
      %v325 = vld [vmem:[#allocation2 + $0x3c] sm:$0xff]
      %v326 = vld [vmem:[#allocation2 + $0x44] sm:$0xf]
      %v327 = vld [vmem:[#allocation2 + $0x48] sm:$0xff]
      %v328 = vld [vmem:[#allocation2 + $0x50] sm:$0xf]
      %v329 = vld [vmem:[#allocation2 + $0x54] sm:$0xff]
      %v330 = vld [vmem:[#allocation2 + $0x5c] sm:$0xf]
      %v331 = vld [vmem:[#allocation2 + $0x60] sm:$0xff]
      %v332 = vld [vmem:[#allocation2 + $0x68] sm:$0xf]
      %v333 = vld [vmem:[%s2] sm:$0xff]
      %335 = vset.pattern.permute.xlu0 0
      %336 = vperm.xlu0 %335, %v333
      %v337 = vpop.permute.xlu0 %336
      %v357 = vunpack.c.l.b16 %v315
      %v358 = vunpack.c.h.b16 %v315
      %v359 = vunpack.c.l.b16 %v316
      %v360 = vunpack.c.l.b16 %v317
      %v361 = vunpack.c.h.b16 %v317
      %v362 = vunpack.c.l.b16 %v318
      %v363 = vunpack.c.l.b16 %v319
      %v364 = vunpack.c.h.b16 %v319
      %v365 = vunpack.c.l.b16 %v320
      %v366 = vunpack.c.l.b16 %v321
      %v367 = vunpack.c.h.b16 %v321
      %v368 = vunpack.c.l.b16 %v322
      %v369 = vunpack.c.l.b16 %v323
      %v370 = vunpack.c.h.b16 %v323
      %v371 = vunpack.c.l.b16 %v324
      %v372 = vunpack.c.l.b16 %v325
      %v373 = vunpack.c.h.b16 %v325
      %v374 = vunpack.c.l.b16 %v326
      %v375 = vunpack.c.l.b16 %v327
      %v376 = vunpack.c.h.b16 %v327
      %v377 = vunpack.c.l.b16 %v328
      %v378 = vunpack.c.l.b16 %v329
      %v379 = vunpack.c.h.b16 %v329
      %v380 = vunpack.c.l.b16 %v330
      %v381 = vunpack.c.l.b16 %v331
      %v382 = vunpack.c.h.b16 %v331
      %v383 = vunpack.c.l.b16 %v332
      %v384 = vpack.c.b16 %v360, %v357
      %v385 = vpack.c.b16 %v361, %v358
      %v386 = vpack.c.b16 %v362, %v359
      %v387 = vpack.c.b16 %v366, %v363
      %v388 = vpack.c.b16 %v367, %v364
      %v389 = vpack.c.b16 %v368, %v365
      %v390 = vpack.c.b16 %v372, %v369
      %v391 = vpack.c.b16 %v373, %v370
      %v392 = vpack.c.b16 %v374, %v371
      %v393 = vpack.c.b16 %v378, %v375
      %v394 = vpack.c.b16 %v379, %v376
      %v395 = vpack.c.b16 %v380, %v377
      %v396 = vpack.c.b16 %v381, %v381
      %v397 = vpack.c.b16 %v382, %v382
      %v398 = vpack.c.b16 %v383, %v383
      %vm411 = vcmask 588800
      %v413 = vsel %vm411, %v314, 0
      %vm415 = vcmask 1043456
      %v417 = vsel %vm415, %v396, 0
      %v420 = vsel %vm415, %v397, 0
      %v423 = vsel %vm415, %v398, 0
      %425 = vmatpush.bf16.msra.mxu0 0
      %426 = vmatpush.bf16.msra.mxu0 0
      %427 = vmatpush.bf16.msra.mxu0 0
      %428 = vmatpush.bf16.msra.mxu0 %v417
      %429 = vmatpush.bf16.msra.mxu0 %v393
      %430 = vmatpush.bf16.msra.mxu0 %v390
      %431 = vmatpush.bf16.msra.mxu0 %v387
      %432 = vmatpush.bf16.msra.mxu0 %v384
      %433 = vmatmul.bf16.gmra.mxu0 %v413
      %v434 = vpop.f32.mrf.mxu0
      %v435 = vadd.f32 %v337, %v434
      %v436 = vpop.f32.mrf.mxu0
      %437 = vdwg.mxu0
      %438 = vmatpush.bf16.msra.mxu0 0
      %439 = vmatpush.bf16.msra.mxu0 0
      %440 = vmatpush.bf16.msra.mxu0 0
      %441 = vmatpush.bf16.msra.mxu0 %v420
      %442 = vmatpush.bf16.msra.mxu0 %v394
      %443 = vmatpush.bf16.msra.mxu0 %v391
      %444 = vmatpush.bf16.msra.mxu0 %v388
      %445 = vmatpush.bf16.msra.mxu0 %v385
      %446 = vmatmul.bf16.gmra.mxu0 %v413
      %v447 = vpop.f32.mrf.mxu0
      %v448 = vadd.f32 %v337, %v447
      %v449 = vpop.f32.mrf.mxu0
      %450 = vdwg.mxu0
      %451 = vmatpush.bf16.msra.mxu0 0
      %452 = vmatpush.bf16.msra.mxu0 0
      %453 = vmatpush.bf16.msra.mxu0 0
      %454 = vmatpush.bf16.msra.mxu0 %v423
      %455 = vmatpush.bf16.msra.mxu0 %v395
      %456 = vmatpush.bf16.msra.mxu0 %v392
      %457 = vmatpush.bf16.msra.mxu0 %v389
      %458 = vmatpush.bf16.msra.mxu0 %v386
      %459 = vmatmul.bf16.gmra.mxu0 %v413
      %v460 = vpop.f32.mrf.mxu0
      %v461 = vadd.f32 %v337, %v460
      %v462 = vpop.f32.mrf.mxu0
      %463 = vdwg.mxu0
      %v464 = vmax.f32 %v435, 0.0
      %v465 = vmax.f32 %v448, 0.0
      %v466 = vmax.f32 %v461, 0.0
      %467 = vst [vmem:[%s170] sm:$0xff] %v464
      %468 = vst [vmem:[%s170 + $0x8] sm:$0xff] %v465
      %vm469 = vcmask 261120
      %470 = vst.msk [vmem:[%s170 + $0x10] sm:$0xff] %vm469, %v466
      %p471 = scmp.lt.s32.totalorder %s14, 1
      %s472 = scalar_select %p471, %s14, 1
      %s473 = smul.addr %s472, 3
      %s474 = smul.addr %s473, 8
      %s475 = scalar_lea.vmem %s3, %s474
      // Predicated region
      $region33: #{conv_sep_pallas.1} parent=31 // pred_check
        %p476 = pneg %p100
      $region34: #{conv_sep_pallas.1} parent=31 // pred_check_branch
        %478 = sbr.rel (%p476) target = $region36
      $region35: #{conv_sep_pallas.1} parent=31 // pred_region
        _
      $region36: #{conv_sep_pallas.1} parent=31 // pred_fallthru
        _
    $region32: #{conv_sep_pallas.1} parent=5 // pred_fallthru
      _
    %p479 = scmp.le.s32.totalorder 2, %s9
    // Predicated region
    $region37: #{conv_sep_pallas.1} parent=5 // pred_check
      %p480 = pneg %p479
    $region38: #{conv_sep_pallas.1} parent=5 // pred_check_branch
      %482 = sbr.rel (%p480) target = $region40
    $region39: #{conv_sep_pallas.1} parent=5 // pred_region
      %s483 = ssub.s32 %s9, 2
      // Predicated region
      $region41: #{conv_sep_pallas.1} parent=39 // pred_check
        %p484 = pneg %p106
      $region42: #{conv_sep_pallas.1} parent=39 // pred_check_branch
        %486 = sbr.rel (%p484) target = $region44
      $region43: #{conv_sep_pallas.1} parent=39 // pred_region
        %p487 = scmp.lt.s32.totalorder %s15, 1
        %s488 = scalar_select %p487, %s15, 1
        %s489 = smul.addr %s488, 3
        %s490 = smul.addr %s489, 8
        %s491 = scalar_lea.vmem %s3, %s490
      $region44: #{conv_sep_pallas.1} parent=39 // pred_fallthru
        _
    $region40: #{conv_sep_pallas.1} parent=5 // pred_fallthru
      _
  $region6: #{conv_sep_pallas.1} parent=0 // loop_footer
    %s13 = sadd.s32 1, %s9
  $region7: #{conv_sep_pallas.1} parent=0 // loop_footer_branch
    %8 = sbr.rel target = $region3
  $region8: #{conv_sep_pallas.1} parent=0 // loop_exit
    _

</llo_original>
